<compile_context>
chip_gen: v7x
topology: tpu7x:2x2x1
jax: 0.10.0
libtpu: 0.0.40
codegen_flags: <defaults>
</compile_context>

<pallas_src>
import jax
import jax.numpy as jnp
from jax.experimental import pallas as pl
from jax.experimental.pallas import tpu as pltpu


def _attn_kernel(dec_ref, enc_ref, w_ref, b_ref, att_ref, map_ref):
    # dec_ref: (1, 1, D)   decoder hidden for this batch element
    # enc_ref: (1, S, E)   encoder outputs for this batch element
    # w_ref  : (A, D + E)  PyTorch Linear weight, columns ordered [decoder | encoder]
    # b_ref  : (1, A)
    # att_ref: (1, 1, E)   attended encoder outputs for this batch element
    # map_ref: (1, 1, S)   attention map row for this batch element
    D = dec_ref.shape[-1]
    f32 = jnp.float32

    dec = dec_ref[0]                      # (1, D)
    enc = enc_ref[0]                      # (S, E)
    wd = w_ref[:, :D]                     # (A, D)  decoder half of the weight
    we = w_ref[:, D:]                     # (A, E)  encoder half of the weight

    # x @ W^T : contract trailing dims of both operands (standard trans_b MXU form).
    dn = (((1,), (1,)), ((), ()))

    # tanh(linear(cat([dec, enc]))) == tanh(dec @ Wd^T + enc @ We^T + b)
    dec_proj = jax.lax.dot_general(dec, wd, dn, preferred_element_type=f32)   # (1, A)
    enc_proj = jax.lax.dot_general(enc, we, dn, preferred_element_type=f32)   # (S, A)
    attn = jnp.tanh(enc_proj + dec_proj + b_ref[...])                         # (S, A)

    # scores[0, s] = sum_a attn[s, a]  (ones-vector MXU contraction -> lane-dense row,
    # no cross-lane XLU reduce, no transpose).
    ones_a = jnp.ones((1, attn.shape[-1]), f32)
    scores = jax.lax.dot_general(ones_a, attn, dn, preferred_element_type=f32)  # (1, S)

    # Softmax over the sequence (lane axis), exact f32.
    m = jnp.max(scores, axis=-1, keepdims=True)                               # (1, 1)
    e = jnp.exp(scores - m)                                                    # (1, S)
    p = e / jnp.sum(e, axis=-1, keepdims=True)                                 # (1, S)

    # attended = softmax-weighted sum of encoder rows.
    attended = jnp.dot(p, enc, preferred_element_type=f32)                     # (1, E)

    # attn_map = p * ||enc_row||  (row sum-of-squares via ones-vector MXU contraction).
    ones_e = jnp.ones((1, enc.shape[-1]), f32)
    norm_sq = jax.lax.dot_general(ones_e, enc * enc, dn,
                                  preferred_element_type=f32)                  # (1, S)
    amap = p * jnp.sqrt(norm_sq)                                               # (1, S)

    att_ref[0] = attended.astype(att_ref.dtype)
    map_ref[0] = amap.astype(map_ref.dtype)


def encoder_decoder_attn(decoder_hidden, encoder_outputs, weight, bias):
    """Matches EncoderDecoderAttn.forward.

    decoder_hidden : (1, B, decoder_size)
    encoder_outputs: (S, B, encoder_size)
    weight         : (attn_size, decoder_size + encoder_size)  (PyTorch Linear layout,
                     columns ordered [decoder_hidden | encoder_outputs] to match cat order)
    bias           : (attn_size,)
    returns: attended_encoder_outputs (B, encoder_size), attn_map (B, S)
    """
    _, B, D = decoder_hidden.shape
    S, _, E = encoder_outputs.shape
    A = weight.shape[0]
    assert weight.shape[1] == D + E, "weight columns must be ordered [decoder | encoder]"

    dec3 = decoder_hidden.reshape(B, 1, D)               # free contiguous reshape of (1,B,D)
    enc_bse = jnp.transpose(encoder_outputs, (1, 0, 2))  # (B,S,E); loop-invariant in a decoder
                                                         # loop -> hoisted by XLA under jit/scan
    b2 = bias.reshape(1, A)

    attended, amap = pl.pallas_call(
        _attn_kernel,
        out_shape=(
            jax.ShapeDtypeStruct((B, 1, E), jnp.float32),
            jax.ShapeDtypeStruct((B, 1, S), jnp.float32),
        ),
        grid=(B,),
        in_specs=[
            pl.BlockSpec((1, 1, D), lambda b: (b, 0, 0)),      # decoder hidden, per batch
            pl.BlockSpec((1, S, E), lambda b: (b, 0, 0)),      # encoder tile, per batch
            pl.BlockSpec((A, D + E), lambda b: (0, 0)),        # weight (resident)
            pl.BlockSpec((1, A), lambda b: (0, 0)),            # bias   (resident)
        ],
        out_specs=(
            pl.BlockSpec((1, 1, E), lambda b: (b, 0, 0)),
            pl.BlockSpec((1, 1, S), lambda b: (b, 0, 0)),
        ),
        compiler_params=pltpu.CompilerParams(
            dimension_semantics=("parallel",),                 # both v7x TensorCores
            vmem_limit_bytes=48 * 1024 * 1024,                 # explicit budget (<= ~48 MiB on v7x)
        ),
    )(dec3, enc_bse, weight, b2)

    # Free metadata reshapes (drop the unit dim) to the module's output contract.
    return attended.reshape(B, E), amap.reshape(B, S)


def _reference(decoder_hidden, encoder_outputs, weight, bias):
    # Pure-JAX transcription of the PyTorch forward, for verification.
    dec = decoder_hidden[0]                          # (B, D)
    enc = jnp.transpose(encoder_outputs, (1, 0, 2))  # (B, S, E)
    S = enc.shape[1]
    rep = jnp.repeat(dec[:, None, :], S, axis=1)     # (B, S, D)
    cat = jnp.concatenate([rep, enc], axis=2)        # (B, S, D+E)
    attn = jnp.tanh(cat @ weight.T + bias)           # (B, S, A)
    attn_sum = jnp.sum(attn, axis=2)                 # (B, S)
    p = jax.nn.softmax(attn_sum, axis=1)             # (B, S)
    attended = jnp.einsum("bs,bse->be", p, enc)      # (B, E)
    norms = jnp.linalg.norm(enc, axis=2)             # (B, S)
    return attended, p * norms


if __name__ == "__main__":
    encoder_size, decoder_size, attn_size = 32, 16, 24
    B, S = 4, 8

    key = jax.random.PRNGKey(0)
    k_dec, k_enc, k_w, k_b = jax.random.split(key, 4)

    decoder_hidden = jax.random.normal(k_dec, (1, B, decoder_size), dtype=jnp.float32)
    encoder_outputs = jax.random.normal(k_enc, (S, B, encoder_size), dtype=jnp.float32)

    # Deterministic parameter init (PyTorch Linear default: U(-1/sqrt(fan_in), 1/sqrt(fan_in))).
    fan_in = encoder_size + decoder_size
    bound = 1.0 / jnp.sqrt(jnp.float32(fan_in))
    weight = jax.random.uniform(k_w, (attn_size, fan_in), jnp.float32, -bound, bound)
    bias = jax.random.uniform(k_b, (attn_size,), jnp.float32, -bound, bound)

    attended, attn_map = encoder_decoder_attn(decoder_hidden, encoder_outputs, weight, bias)
    attended = jax.block_until_ready(attended)
    attn_map = jax.block_until_ready(attn_map)

    ref_attended, ref_map = _reference(decoder_hidden, encoder_outputs, weight, bias)
    assert attended.shape == (B, encoder_size) and attn_map.shape == (B, S)
    assert jnp.allclose(attended, ref_attended, atol=1e-5, rtol=1e-5)
    assert jnp.allclose(attn_map, ref_map, atol=1e-5, rtol=1e-5)

    print("KERNEL_OK")
</pallas_src>

<mosaic_0001>
module attributes {stable_mosaic.version = 11 : i64} {
  func.func @_attn_kernel(%arg0: i32, %arg1: memref<1x1x16xf32, #tpu.memory_space<vmem>>, %arg2: memref<1x8x32xf32, #tpu.memory_space<vmem>>, %arg3: memref<24x48xf32, #tpu.memory_space<vmem>>, %arg4: memref<1x24xf32, #tpu.memory_space<vmem>>, %arg5: memref<1x1x32xf32, #tpu.memory_space<vmem>>, %arg6: memref<1x1x8xf32, #tpu.memory_space<vmem>>) attributes {dimension_semantics = [#tpu.dimension_semantics<parallel>], iteration_bounds = array<i64: 4>, scalar_prefetch = 0 : i64, scratch_operands = 0 : i64, tpu.core_type = #tpu.core_type<tc>, window_params = [{transform_indices = @transform_0, window_bounds = array<i64: 1, 1, 16>}, {transform_indices = @transform_1, window_bounds = array<i64: 1, 8, 32>}, {pipeline_mode = #tpu.pipeline_mode<synchronous>, transform_indices = @transform_2, window_bounds = array<i64: 24, 48>}, {pipeline_mode = #tpu.pipeline_mode<synchronous>, transform_indices = @transform_3, window_bounds = array<i64: 1, 24>}, {transform_indices = @transform_4, window_bounds = array<i64: 1, 1, 32>}, {transform_indices = @transform_5, window_bounds = array<i64: 1, 1, 8>}]} {
    %c0 = arith.constant 0 : index
    %c0_0 = arith.constant 0 : index
    %c0_1 = arith.constant 0 : index
    %0 = vector.load %arg1[%c0, %c0_0, %c0_1] : memref<1x1x16xf32, #tpu.memory_space<vmem>>, vector<1x1x16xf32>
    %1 = vector.shape_cast %0 : vector<1x1x16xf32> to vector<1x16xf32>
    %c0_2 = arith.constant 0 : index
    %c0_3 = arith.constant 0 : index
    %c0_4 = arith.constant 0 : index
    %2 = vector.load %arg2[%c0_2, %c0_3, %c0_4] : memref<1x8x32xf32, #tpu.memory_space<vmem>>, vector<1x8x32xf32>
    %3 = vector.shape_cast %2 : vector<1x8x32xf32> to vector<8x32xf32>
    %c0_5 = arith.constant 0 : index
    %c0_6 = arith.constant 0 : index
    %4 = vector.load %arg3[%c0_5, %c0_6] : memref<24x48xf32, #tpu.memory_space<vmem>>, vector<24x16xf32>
    %c0_7 = arith.constant 0 : index
    %c16 = arith.constant 16 : index
    %5 = vector.load %arg3[%c0_7, %c16] : memref<24x48xf32, #tpu.memory_space<vmem>>, vector<24x32xf32>
    %cst = arith.constant dense<0.000000e+00> : vector<1x24xf32>
    %6 = tpu.matmul %1, %4, %cst {dimension_numbers = #tpu.dot_dimension_numbers<[1], [1], [0], [0], [0, 0, 1, 0], [], []>} : vector<1x16xf32>, vector<24x16xf32>, vector<1x24xf32> -> vector<1x24xf32>
    %cst_8 = arith.constant dense<0.000000e+00> : vector<8x24xf32>
    %7 = tpu.matmul %3, %5, %cst_8 {dimension_numbers = #tpu.dot_dimension_numbers<[1], [1], [0], [0], [0, 0, 1, 0], [], []>} : vector<8x32xf32>, vector<24x32xf32>, vector<8x24xf32> -> vector<8x24xf32>
    %8 = vector.broadcast %6 : vector<1x24xf32> to vector<8x24xf32>
    %9 = arith.addf %7, %8 : vector<8x24xf32>
    %c0_9 = arith.constant 0 : index
    %c0_10 = arith.constant 0 : index
    %10 = vector.load %arg4[%c0_9, %c0_10] : memref<1x24xf32, #tpu.memory_space<vmem>>, vector<1x24xf32>
    %11 = vector.broadcast %10 : vector<1x24xf32> to vector<8x24xf32>
    %12 = arith.addf %9, %11 : vector<8x24xf32>
    %13 = math.tanh %12 : vector<8x24xf32>
    %cst_11 = arith.constant 1.000000e+00 : f32
    %14 = vector.broadcast %cst_11 : f32 to vector<1x24xf32>
    %cst_12 = arith.constant dense<0.000000e+00> : vector<1x8xf32>
    %15 = tpu.matmul %14, %13, %cst_12 {dimension_numbers = #tpu.dot_dimension_numbers<[1], [1], [0], [0], [0, 0, 1, 0], [], []>} : vector<1x24xf32>, vector<8x24xf32>, vector<1x8xf32> -> vector<1x8xf32>
    %cst_13 = arith.constant dense<0xFF800000> : vector<1xf32>
    %16 = vector.multi_reduction <maximumf>, %15, %cst_13 [1] : vector<1x8xf32> to vector<1xf32>
    %17 = vector.shape_cast %16 : vector<1xf32> to vector<1x1xf32>
    %18 = vector.broadcast %17 : vector<1x1xf32> to vector<1x8xf32>
    %19 = arith.subf %15, %18 : vector<1x8xf32>
    %20 = math.exp %19 : vector<1x8xf32>
    %cst_14 = arith.constant dense<0.000000e+00> : vector<1xf32>
    %21 = vector.multi_reduction <add>, %20, %cst_14 [1] : vector<1x8xf32> to vector<1xf32>
    %22 = vector.shape_cast %21 : vector<1xf32> to vector<1x1xf32>
    %23 = vector.broadcast %22 : vector<1x1xf32> to vector<1x8xf32>
    %24 = arith.divf %20, %23 : vector<1x8xf32>
    %cst_15 = arith.constant dense<0.000000e+00> : vector<1x32xf32>
    %25 = tpu.matmul %24, %3, %cst_15 {dimension_numbers = #tpu.dot_dimension_numbers<[1], [0], [0], [1], [0, 0, 1, 1], [], []>} : vector<1x8xf32>, vector<8x32xf32>, vector<1x32xf32> -> vector<1x32xf32>
    %cst_16 = arith.constant 1.000000e+00 : f32
    %26 = vector.broadcast %cst_16 : f32 to vector<1x32xf32>
    %27 = arith.mulf %3, %3 : vector<8x32xf32>
    %cst_17 = arith.constant dense<0.000000e+00> : vector<1x8xf32>
    %28 = tpu.matmul %26, %27, %cst_17 {dimension_numbers = #tpu.dot_dimension_numbers<[1], [1], [0], [0], [0, 0, 1, 0], [], []>} : vector<1x32xf32>, vector<8x32xf32>, vector<1x8xf32> -> vector<1x8xf32>
    %29 = math.sqrt %28 : vector<1x8xf32>
    %30 = arith.mulf %24, %29 : vector<1x8xf32>
    %c0_18 = arith.constant 0 : index
    %c0_19 = arith.constant 0 : index
    %c0_20 = arith.constant 0 : index
    %31 = vector.load %arg5[%c0_18, %c0_19, %c0_20] : memref<1x1x32xf32, #tpu.memory_space<vmem>>, vector<1x1x32xf32>
    %32 = vector.shape_cast %31 : vector<1x1x32xf32> to vector<1x32xf32>
    %33 = vector.shape_cast %25 : vector<1x32xf32> to vector<1x1x32xf32>
    tpu.vector_store %arg5[%c0_18, %c0_19, %c0_20], %33 {strides = array<i32>} : memref<1x1x32xf32, #tpu.memory_space<vmem>>, vector<1x1x32xf32>,
    %c0_21 = arith.constant 0 : index
    %c0_22 = arith.constant 0 : index
    %c0_23 = arith.constant 0 : index
    %34 = vector.load %arg6[%c0_21, %c0_22, %c0_23] : memref<1x1x8xf32, #tpu.memory_space<vmem>>, vector<1x1x8xf32>
    %35 = vector.shape_cast %34 : vector<1x1x8xf32> to vector<1x8xf32>
    %36 = vector.shape_cast %30 : vector<1x8xf32> to vector<1x1x8xf32>
    tpu.vector_store %arg6[%c0_21, %c0_22, %c0_23], %36 {strides = array<i32>} : memref<1x1x8xf32, #tpu.memory_space<vmem>>, vector<1x1x8xf32>,
    return
  }
  func.func @transform_0(%arg0: i32) -> (i32, i32, i32) {
    %c0_i32 = arith.constant 0 : i32
    %c0_i32_0 = arith.constant 0 : i32
    %c0_i32_1 = arith.constant 0 : i32
    return %arg0, %c0_i32, %c0_i32_0 : i32, i32, i32
  }
  func.func @transform_1(%arg0: i32) -> (i32, i32, i32) {
    %c0_i32 = arith.constant 0 : i32
    %c0_i32_0 = arith.constant 0 : i32
    %c0_i32_1 = arith.constant 0 : i32
    return %arg0, %c0_i32, %c0_i32_0 : i32, i32, i32
  }
  func.func @transform_2(%arg0: i32) -> (i32, i32) {
    %c0_i32 = arith.constant 0 : i32
    %c0_i32_0 = arith.constant 0 : i32
    %c0_i32_1 = arith.constant 0 : i32
    return %c0_i32, %c0_i32_0 : i32, i32
  }
  func.func @transform_3(%arg0: i32) -> (i32, i32) {
    %c0_i32 = arith.constant 0 : i32
    %c0_i32_0 = arith.constant 0 : i32
    %c0_i32_1 = arith.constant 0 : i32
    return %c0_i32, %c0_i32_0 : i32, i32
  }
  func.func @transform_4(%arg0: i32) -> (i32, i32, i32) {
    %c0_i32 = arith.constant 0 : i32
    %c0_i32_0 = arith.constant 0 : i32
    %c0_i32_1 = arith.constant 0 : i32
    return %arg0, %c0_i32, %c0_i32_0 : i32, i32, i32
  }
  func.func @transform_5(%arg0: i32) -> (i32, i32, i32) {
    %c0_i32 = arith.constant 0 : i32
    %c0_i32_0 = arith.constant 0 : i32
    %c0_i32_1 = arith.constant 0 : i32
    return %arg0, %c0_i32, %c0_i32_0 : i32, i32, i32
  }
}

</mosaic_0001>

<llo_original>
// kernel: tpu_custom_call.1
$region0: #{tpu_custom_call.1}
  #allocation0 [shape = 'u32[]', space=smem, size = 0x4, offset = 0x4, fixed_abs, tag = 'smem constant byte address 0x4 - core index']
  #allocation1 [shape = 'u32[144,128]{1,0:T(1,128)}', space=vmem, size = 0x12000, scoped, tag = 'internal scratch']
  %s0 = inlined_call_operand.hbm [shape: f32[4,1,16], index: 0, kind: input, shape index: {}]
  %s1 = inlined_call_operand.hbm [shape: f32[4,8,32], index: 1, kind: input, shape index: {}]
  %s2 = inlined_call_operand.hbm [shape: f32[24,48], index: 2, kind: input, shape index: {}]
  %s3 = inlined_call_operand.vmem [shape: f32[1,24], index: 3, kind: input, shape index: {}]
  %s4 = inlined_call_operand.hbm [shape: f32[4,1,32], index: 4, kind: output, shape index: {0}]
  %s5 = inlined_call_operand.hbm [shape: f32[4,1,8], index: 5, kind: output, shape index: {1}]
  %6 = xla_tuple %s4, %s5
  %s7 = sld [smem:[#allocation0]]
  $region69: #{tpu_custom_call.1} parent=0
    _
  %s9 = ssub.s32 1, %s7
  %s10 = scalar_select 0, %s9, %s7
  $region1: #{tpu_custom_call.1} parent=0
    #allocation2 [shape = 'u8[1024]{0}', space=vmem, size = 0x400, scoped, tag = 'input window, operand 0']
    #allocation3 [shape = 's32[2]{0}', space=sflag, size = 0x8, scoped, tag = 'scoped memory for tpu_custom_call.1']
    #allocation4 [shape = 's32[2]{0}', space=sflag, size = 0x8, scoped, tag = 'scoped memory for tpu_custom_call.1']
    #allocation5 [shape = 'u8[8192]{0}', space=vmem, size = 0x2000, scoped, tag = 'input window, operand 1']
    #allocation6 [shape = 's32[2]{0}', space=sflag, size = 0x8, scoped, tag = 'scoped memory for tpu_custom_call.1']
    #allocation7 [shape = 'u8[12288]{0}', space=vmem, size = 0x3000, scoped, tag = 'input window, operand 2, single buffered']
    #allocation8 [shape = 'u8[1024]{0}', space=vmem, size = 0x400, scoped, tag = 'output window, operand 0']
    #allocation9 [shape = 'u8[1024]{0}', space=vmem, size = 0x400, scoped, tag = 'output window, operand 1']
    #allocation10 [shape = 's32[2]{0}', space=sflag, size = 0x8, scoped, tag = 'scoped memory for tpu_custom_call.1']
    %11 = vsyncpa [#allocation3], 0
    %s12 = scalar_lea.sflag [#allocation3], 1
    %13 = vsyncpa %s12, 0
    %14 = vsyncpa [#allocation6], 0
    %s15 = scalar_lea.sflag [#allocation6], 1
    %16 = vsyncpa %s15, 0
    %17 = vsyncpa [#allocation4], 0
    %s18 = scalar_lea.sflag [#allocation4], 1
    %19 = vsyncpa %s18, 0
    %20 = vsyncpa [#allocation10], 0
    %s21 = scalar_lea.sflag [#allocation10], 1
    %22 = vsyncpa %s21, 0
    loop: start=0, step=1, limit=6
    $region2: #{tpu_custom_call.1} parent=1 // loop_pre_header
      _
    $region3: #{tpu_custom_call.1} parent=1 // loop_header
      %s24 = sphi 0, %s28
      %p25 = scmp.ge.s32.totalorder %s24, 6
      %s34 = sphi 0, %s36
      %s37 = sphi 0, %s34
      %s38 = sphi 0, %s37
      %s54 = sphi 0, %s38
      %s60 = sphi 0, %s62
      %s63 = sphi 0, %s60
      %s64 = sphi 0, %s63
      %s80 = sphi 0, %s64
      %s84 = sphi 0, %s84
      %s86 = sphi 0, %s84
      %s87 = sphi 0, %s86
      %s101 = sphi 0, %s87
      %s105 = sphi 0, %s105
      %s107 = sphi 0, %s105
      %s108 = sphi 0, %s107
      %s122 = sphi 0, %s108
      %s128 = sphi 0, %s130
      %s131 = sphi 0, %s128
      %s132 = sphi 0, %s131
      %s148 = sphi 0, %s132
      %s154 = sphi 0, %s156
      %s157 = sphi 0, %s154
      %s158 = sphi 0, %s157
      %s174 = sphi 0, %s158
    $region4: #{tpu_custom_call.1} parent=1 // loop_header_branch
      %27 = sbr.rel (%p25) target = $region8
    $region5: #{tpu_custom_call.1} parent=1 // loop_body
      %s29 = ssub.s32 %s24, 1
      %s30 = ssub.s32 %s24, 2
      %s31 = sadd.s32 %s24, 1
      %s32 = ssub.s32 %s24, %s31
      %p33 = scmp.eq.s32.totalorder %s32, 0
      %s35 = sadd.s32 %s34, 1
      %s36 = scalar_select %p33, %s34, %s35
      %p39 = pneg %p33
      %p40 = scmp.eq.s32.totalorder %s24, 3
      %p41 = por %p39, %p40
      %p42 = scmp.ne.s32.totalorder %s34, %s37
      %p43 = scmp.eq.s32.totalorder %s24, 0
      %p44 = por %p42, %p43
      %p45 = scmp.ne.s32.totalorder %s34, %s37
      %p46 = scmp.eq.s32.totalorder %s29, 3
      %p47 = por %p45, %p46
      %p48 = scmp.ne.s32.totalorder %s37, %s38
      %p49 = scmp.eq.s32.totalorder %s29, 0
      %p50 = por %p48, %p49
      %p51 = scmp.ne.s32.totalorder %s37, %s38
      %p52 = scmp.eq.s32.totalorder %s30, 3
      %p53 = por %p51, %p52
      %p55 = scmp.ne.s32.totalorder %s38, %s54
      %p56 = scmp.eq.s32.totalorder %s30, 0
      %p57 = por %p55, %p56
      %s58 = ssub.s32 %s24, %s31
      %p59 = scmp.eq.s32.totalorder %s58, 0
      %s61 = sadd.s32 %s60, 1
      %s62 = scalar_select %p59, %s60, %s61
      %p65 = pneg %p59
      %p66 = scmp.eq.s32.totalorder %s24, 3
      %p67 = por %p65, %p66
      %p68 = scmp.ne.s32.totalorder %s60, %s63
      %p69 = scmp.eq.s32.totalorder %s24, 0
      %p70 = por %p68, %p69
      %p71 = scmp.ne.s32.totalorder %s60, %s63
      %p72 = scmp.eq.s32.totalorder %s29, 3
      %p73 = por %p71, %p72
      %p74 = scmp.ne.s32.totalorder %s63, %s64
      %p75 = scmp.eq.s32.totalorder %s29, 0
      %p76 = por %p74, %p75
      %p77 = scmp.ne.s32.totalorder %s63, %s64
      %p78 = scmp.eq.s32.totalorder %s30, 3
      %p79 = por %p77, %p78
      %p81 = scmp.ne.s32.totalorder %s64, %s80
      %p82 = scmp.eq.s32.totalorder %s30, 0
      %p83 = por %p81, %p82
      %s85 = sadd.s32 %s84, 1
      %p88 = scmp.eq.s32.totalorder %s24, 3
      %p89 = scmp.ne.s32.totalorder %s84, %s86
      %p90 = scmp.eq.s32.totalorder %s24, 0
      %p91 = por %p89, %p90
      %p92 = scmp.ne.s32.totalorder %s84, %s86
      %p93 = scmp.eq.s32.totalorder %s29, 3
      %p94 = por %p92, %p93
      %p95 = scmp.ne.s32.totalorder %s86, %s87
      %p96 = scmp.eq.s32.totalorder %s29, 0
      %p97 = por %p95, %p96
      %p98 = scmp.ne.s32.totalorder %s86, %s87
      %p99 = scmp.eq.s32.totalorder %s30, 3
      %p100 = por %p98, %p99
      %p102 = scmp.ne.s32.totalorder %s87, %s101
      %p103 = scmp.eq.s32.totalorder %s30, 0
      %p104 = por %p102, %p103
      %s106 = sadd.s32 %s105, 1
      %p109 = scmp.eq.s32.totalorder %s24, 3
      %p110 = scmp.ne.s32.totalorder %s105, %s107
      %p111 = scmp.eq.s32.totalorder %s24, 0
      %p112 = por %p110, %p111
      %p113 = scmp.ne.s32.totalorder %s105, %s107
      %p114 = scmp.eq.s32.totalorder %s29, 3
      %p115 = por %p113, %p114
      %p116 = scmp.ne.s32.totalorder %s107, %s108
      %p117 = scmp.eq.s32.totalorder %s29, 0
      %p118 = por %p116, %p117
      %p119 = scmp.ne.s32.totalorder %s107, %s108
      %p120 = scmp.eq.s32.totalorder %s30, 3
      %p121 = por %p119, %p120
      %p123 = scmp.ne.s32.totalorder %s108, %s122
      %p124 = scmp.eq.s32.totalorder %s30, 0
      %p125 = por %p123, %p124
      %s126 = ssub.s32 %s24, %s31
      %p127 = scmp.eq.s32.totalorder %s126, 0
      %s129 = sadd.s32 %s128, 1
      %s130 = scalar_select %p127, %s128, %s129
      %p133 = pneg %p127
      %p134 = scmp.eq.s32.totalorder %s24, 3
      %p135 = por %p133, %p134
      %p136 = scmp.ne.s32.totalorder %s128, %s131
      %p137 = scmp.eq.s32.totalorder %s24, 0
      %p138 = por %p136, %p137
      %p139 = scmp.ne.s32.totalorder %s128, %s131
      %p140 = scmp.eq.s32.totalorder %s29, 3
      %p141 = por %p139, %p140
      %p142 = scmp.ne.s32.totalorder %s131, %s132
      %p143 = scmp.eq.s32.totalorder %s29, 0
      %p144 = por %p142, %p143
      %p145 = scmp.ne.s32.totalorder %s131, %s132
      %p146 = scmp.eq.s32.totalorder %s30, 3
      %p147 = por %p145, %p146
      %p149 = scmp.ne.s32.totalorder %s132, %s148
      %p150 = scmp.eq.s32.totalorder %s30, 0
      %p151 = por %p149, %p150
      %s152 = ssub.s32 %s24, %s31
      %p153 = scmp.eq.s32.totalorder %s152, 0
      %s155 = sadd.s32 %s154, 1
      %s156 = scalar_select %p153, %s154, %s155
      %p159 = pneg %p153
      %p160 = scmp.eq.s32.totalorder %s24, 3
      %p161 = por %p159, %p160
      %p162 = scmp.ne.s32.totalorder %s154, %s157
      %p163 = scmp.eq.s32.totalorder %s24, 0
      %p164 = por %p162, %p163
      %p165 = scmp.ne.s32.totalorder %s154, %s157
      %p166 = scmp.eq.s32.totalorder %s29, 3
      %p167 = por %p165, %p166
      %p168 = scmp.ne.s32.totalorder %s157, %s158
      %p169 = scmp.eq.s32.totalorder %s29, 0
      %p170 = por %p168, %p169
      %p171 = scmp.ne.s32.totalorder %s157, %s158
      %p172 = scmp.eq.s32.totalorder %s30, 3
      %p173 = por %p171, %p172
      %p175 = scmp.ne.s32.totalorder %s158, %s174
      %p176 = scmp.eq.s32.totalorder %s30, 0
      %p177 = por %p175, %p176
      %p178 = scmp.le.s32.totalorder 1, %s24
      %p179 = scmp.lt.s32.totalorder %s24, 5
      %p180 = pnand %p178, %p179
      %p181 = pneg %p180
      // Predicated region
      $region9: #{tpu_custom_call.1} parent=5 // pred_check
        _
      $region10: #{tpu_custom_call.1} parent=5 // pred_check_branch
        %183 = sbr.rel (%p180) target = $region12
      $region11: #{tpu_custom_call.1} parent=5 // pred_region
        %s184 = ssub.s32 %s24, 1
        // Predicated region
        $region13: #{tpu_custom_call.1} parent=11 // pred_check
          %p185 = pneg %p97
        $region14: #{tpu_custom_call.1} parent=11 // pred_check_branch
          %187 = sbr.rel (%p185) target = $region16
        $region15: #{tpu_custom_call.1} parent=11 // pred_region
          %s189 = ssub.s32 384, 384
          %190 = vsyncadd [#allocation6], %s189
          %s191 = sshll.u32 [#allocation7], 4
          %s192 = int_to_ptr.vmem [resolvable:$true] %s191
          %197 = dma.hbm_to_vmem [thread:$0]  %s2, 384, %s192, [#allocation6], 128, 128, 8
        $region16: #{tpu_custom_call.1} parent=11 // pred_fallthru
          _
        // Predicated region
        $region17: #{tpu_custom_call.1} parent=11 // pred_check
          %p198 = pneg %p118
        $region18: #{tpu_custom_call.1} parent=11 // pred_check_branch
          %200 = sbr.rel (%p198) target = $region20
        $region19: #{tpu_custom_call.1} parent=11 // pred_region
          _
        $region20: #{tpu_custom_call.1} parent=11 // pred_fallthru
          _
      $region12: #{tpu_custom_call.1} parent=5 // pred_fallthru
        _
      %p201 = scmp.lt.s32.totalorder %s24, 4
      // Predicated region
      $region21: #{tpu_custom_call.1} parent=5 // pred_check
        %p202 = pneg %p201
      $region22: #{tpu_custom_call.1} parent=5 // pred_check_branch
        %204 = sbr.rel (%p202) target = $region24
      $region23: #{tpu_custom_call.1} parent=5 // pred_region
        // Predicated region
        $region25: #{tpu_custom_call.1} parent=23 // pred_check
          %p205 = pneg %p44
        $region26: #{tpu_custom_call.1} parent=23 // pred_check_branch
          %207 = sbr.rel (%p205) target = $region28
        $region27: #{tpu_custom_call.1} parent=23 // pred_region
          %s208 = sand.u32 %s34, 1
          %s209 = scalar_lea.sflag [#allocation3], %s208
          %s210 = sand.u32 %s34, 1
          %s211 = scalar_lea.vmem [#allocation2], %s210
          %s213 = ssub.s32 16, 16
          %214 = vsyncadd %s209, %s213
          %s215 = smul.addr %s24, 16
          %s216 = scalar_lea.hbm %s0, %s215
          %s218 = sshll.u32 %s211, 4
          %s219 = int_to_ptr.vmem [resolvable:$true] %s218
          %221 = dma.hbm_to_vmem [thread:$0]  %s216, 16, %s219, %s209
        $region28: #{tpu_custom_call.1} parent=23 // pred_fallthru
          _
        // Predicated region
        $region29: #{tpu_custom_call.1} parent=23 // pred_check
          %p222 = pneg %p70
        $region30: #{tpu_custom_call.1} parent=23 // pred_check_branch
          %224 = sbr.rel (%p222) target = $region32
        $region31: #{tpu_custom_call.1} parent=23 // pred_region
          %s225 = sand.u32 %s24, 1
          %s226 = scalar_lea.sflag [#allocation6], %s225
          %s227 = sand.u32 %s60, 1
          %s228 = smul.addr %s227, 8
          %s229 = scalar_lea.vmem [#allocation5], %s228
          %s231 = ssub.s32 128, 128
          %232 = vsyncadd %s226, %s231
          %s233 = smul.addr %s24, 128
          %s234 = scalar_lea.hbm %s1, %s233
          %s236 = sshll.u32 %s229, 4
          %s237 = int_to_ptr.vmem [resolvable:$true] %s236
          %239 = dma.hbm_to_vmem [thread:$0]  %s234, 128, %s237, %s226
        $region32: #{tpu_custom_call.1} parent=23 // pred_fallthru
          _
      $region24: #{tpu_custom_call.1} parent=5 // pred_fallthru
        _
      %p240 = scmp.le.s32.totalorder 1, %s24
      %p241 = scmp.lt.s32.totalorder %s24, 5
      %p242 = pnand %p240, %p241
      %p243 = pneg %p242
      // Predicated region
      $region33: #{tpu_custom_call.1} parent=5 // pred_check
        _
      $region34: #{tpu_custom_call.1} parent=5 // pred_check_branch
        %245 = sbr.rel (%p242) target = $region36
      $region35: #{tpu_custom_call.1} parent=5 // pred_region
        %s246 = ssub.s32 %s24, 1
        %s247 = sand.u32 %s37, 1
        %s248 = scalar_lea.sflag [#allocation3], %s247
        %s249 = sand.u32 %s37, 1
        %s250 = scalar_lea.vmem [#allocation2], %s249
        // Predicated region
        $region37: #{tpu_custom_call.1} parent=35 // pred_check
          %p251 = pneg %p50
        $region38: #{tpu_custom_call.1} parent=35 // pred_check_branch
          %253 = sbr.rel (%p251) target = $region40
        $region39: #{tpu_custom_call.1} parent=35 // pred_region
          %254 = dma.done %s248, 16
        $region40: #{tpu_custom_call.1} parent=35 // pred_fallthru
          _
        %s255 = sand.u32 %s29, 1
        %s256 = scalar_lea.sflag [#allocation6], %s255
        %s257 = sand.u32 %s63, 1
        %s258 = smul.addr %s257, 8
        %s259 = scalar_lea.vmem [#allocation5], %s258
        // Predicated region
        $region41: #{tpu_custom_call.1} parent=35 // pred_check
          %p260 = pneg %p76
        $region42: #{tpu_custom_call.1} parent=35 // pred_check_branch
          %262 = sbr.rel (%p260) target = $region44
        $region43: #{tpu_custom_call.1} parent=35 // pred_region
          %263 = dma.done %s256, 128
        $region44: #{tpu_custom_call.1} parent=35 // pred_fallthru
          _
        // Predicated region
        $region45: #{tpu_custom_call.1} parent=35 // pred_check
          %p264 = pneg %p97
        $region46: #{tpu_custom_call.1} parent=35 // pred_check_branch
          %266 = sbr.rel (%p264) target = $region48
        $region47: #{tpu_custom_call.1} parent=35 // pred_region
          %267 = dma.done [#allocation6], 384
        $region48: #{tpu_custom_call.1} parent=35 // pred_fallthru
          _
        %s268 = sand.u32 %s37, 1
        %s269 = scalar_lea.sflag [#allocation3], %s268
        %s270 = sand.u32 %s37, 1
        %s271 = scalar_lea.vmem [#allocation2], %s270
        %p272 = pneg %p50
        %p273 = pneg %p47
        %s274 = sand.u32 %s29, 1
        %s275 = scalar_lea.sflag [#allocation6], %s274
        %s276 = sand.u32 %s63, 1
        %s277 = smul.addr %s276, 8
        %s278 = scalar_lea.vmem [#allocation5], %s277
        %p279 = pneg %p76
        %p280 = pneg %p73
        %p281 = pneg %p97
        %p282 = pneg %p94
        %p283 = pneg %p118
        %p284 = pneg %p115
        %p285 = pneg %p144
        %p286 = pneg %p141
        %s287 = sand.u32 %s131, 1
        %s288 = scalar_lea.sflag [#allocation4], %s287
        %s289 = sand.u32 %s131, 1
        %s290 = scalar_lea.vmem [#allocation8], %s289
        %p291 = pneg %p170
        %p292 = pneg %p167
        %s293 = sand.u32 %s157, 1
        %s294 = scalar_lea.sflag [#allocation10], %s293
        %s295 = sand.u32 %s157, 1
        %s296 = scalar_lea.vmem [#allocation9], %s295
        %v297 = vld [vmem:[%s250] sm:$0x1]
        %v298 = vld [vmem:[%s259] sm:$0xff]
        %v299 = vld [vmem:[#allocation7] sm:$0xff]
        %v300 = vld [vmem:[#allocation7 + $0x8] sm:$0xff]
        %v301 = vld [vmem:[#allocation7 + $0x10] sm:$0xff]
        %vm302 = vcmask 130048
        %v304 = vsel %vm302, %v297, 0
        %v307 = vsel %vm302, %v299, 0
        %v310 = vsel %vm302, %v300, 0
        %v313 = vsel %vm302, %v301, 0
        %315 = vmatprep.subr.mxu0 0.0
        %316 = vmatpush1.xpose.msra.mxu0 %v307
        %317 = vmatprep.subr.mxu0 0.0
        %318 = vmatpush1.xpose.msra.mxu0 %v310
        %319 = vmatprep.subr.mxu0 0.0
        %320 = vmatpush1.xpose.msra.mxu0 %v313
        %321 = vmatprep.subr.mxu0 0.0
        %322 = vmatpush1.xpose.msra.mxu0 0.0
        %323 = vmatprep.subr.mxu0 0.0
        %324 = vmatpush1.xpose.msra.mxu0 0.0
        %325 = vmatprep.subr.mxu0 0.0
        %326 = vmatpush1.xpose.msra.mxu0 0.0
        %327 = vmatprep.subr.mxu0 0.0
        %328 = vmatpush1.xpose.msra.mxu0 0.0
        %329 = vmatprep.subr.mxu0 0.0
        %330 = vmatpush1.xpose.msra.mxu0 0.0
        %331 = vmatprep.subr.mxu0 0.0
        %332 = vmatpush1.xpose.msra.mxu0 0.0
        %333 = vmatprep.subr.mxu0 0.0
        %334 = vmatpush1.xpose.msra.mxu0 0.0
        %335 = vmatprep.subr.mxu0 0.0
        %336 = vmatpush1.xpose.msra.mxu0 0.0
        %337 = vmatprep.subr.mxu0 0.0
        %338 = vmatpush1.xpose.msra.mxu0 0.0
        %339 = vmatprep.subr.mxu0 0.0
        %340 = vmatpush1.xpose.msra.mxu0 0.0
        %341 = vmatprep.subr.mxu0 0.0
        %342 = vmatpush1.xpose.msra.mxu0 0.0
        %343 = vmatprep.subr.mxu0 0.0
        %344 = vmatpush1.xpose.msra.mxu0 0.0
        %345 = vmatprep.subr.mxu0 0.0
        %346 = vmatpush1.xpose.msra.mxu0 0.0
        %347 = vmatprep.subr.mxu0 0.0
        %348 = vmatpush1.xpose.msra.mxu0 0.0
        %349 = vmatprep.subr.mxu0 0.0
        %350 = vmatpush1.xpose.msra.mxu0 0.0
        %351 = vmatprep.subr.mxu0 0.0
        %352 = vmatpush1.xpose.msra.mxu0 0.0
        %353 = vmatprep.subr.mxu0 0.0
        %354 = vmatpush1.xpose.msra.mxu0 0.0
        %355 = vmatprep.subr.mxu0 0.0
        %356 = vmatpush1.xpose.msra.mxu0 0.0
        %357 = vmatprep.subr.mxu0 0.0
        %358 = vmatpush1.xpose.msra.mxu0 0.0
        %359 = vmatprep.subr.mxu0 0.0
        %360 = vmatpush1.xpose.msra.mxu0 0.0
        %361 = vmatprep.subr.mxu0 0.0
        %362 = vmatpush1.xpose.msra.mxu0 0.0
        %363 = vmatprep.subr.mxu0 0.0
        %364 = vmatpush1.xpose.msra.mxu0 0.0
        %365 = vmatprep.subr.mxu0 0.0
        %366 = vmatpush1.xpose.msra.mxu0 0.0
        %367 = vmatprep.subr.mxu0 0.0
        %368 = vmatpush1.xpose.msra.mxu0 0.0
        %369 = vmatprep.subr.mxu0 0.0
        %370 = vmatpush1.xpose.msra.mxu0 0.0
        %371 = vmatprep.subr.mxu0 0.0
        %372 = vmatpush1.xpose.msra.mxu0 0.0
        %373 = vmatprep.subr.mxu0 0.0
        %374 = vmatpush1.xpose.msra.mxu0 0.0
        %375 = vmatprep.subr.mxu0 0.0
        %376 = vmatpush1.xpose.msra.mxu0 0.0
        %377 = vmatprep.subr.mxu0 0.0
        %378 = vmatpush1.xpose.msra.mxu0 0.0
        %379 = vmatprep.mubr.f32.mxu0 0.0
        %380 = vmatmul.mubr.f32.gmra.mrb[0].mxu0 %v304
        %v381 = vpop.f32.mrb[0].mxu0
        %v382 = vadd.f32 0.0, %v381
        %v383 = vpop.f32.mrb[0].mxu0
        %384 = vdwg.mxu0
        %v385 = vlaneseq
        %v386 = vshrl.u32 %v385, 7
        %v387 = vsub.s32 0, %v386
        %v388 = vrot.slane %v382, %v387
        %389 = vrot.lane.b32.xlu0 %v299, 112
        %v390 = vpop.permute.xlu0 %389
        %391 = vrot.lane.b32.xlu0 %v300, 112
        %v392 = vpop.permute.xlu0 %391
        %393 = vrot.lane.b32.xlu0 %v301, 112
        %v394 = vpop.permute.xlu0 %393
        %vm395 = vcmask 261120
        %v397 = vsel %vm395, %v298, 0
        %v399 = vsel %vm395, %v390, 0
        %v401 = vsel %vm395, %v392, 0
        %v403 = vsel %vm395, %v394, 0
        %405 = vmatprep.subr.mxu0 0.0
        %406 = vmatpush1.xpose.msra.mxu0 %v399
        %407 = vmatprep.subr.mxu0 0.0
        %408 = vmatpush1.xpose.msra.mxu0 %v401
        %409 = vmatprep.subr.mxu0 0.0
        %410 = vmatpush1.xpose.msra.mxu0 %v403
        %411 = vmatprep.subr.mxu0 0.0
        %412 = vmatpush1.xpose.msra.mxu0 0.0
        %413 = vmatprep.subr.mxu0 0.0
        %414 = vmatpush1.xpose.msra.mxu0 0.0
        %415 = vmatprep.subr.mxu0 0.0
        %416 = vmatpush1.xpose.msra.mxu0 0.0
        %417 = vmatprep.subr.mxu0 0.0
        %418 = vmatpush1.xpose.msra.mxu0 0.0
        %419 = vmatprep.subr.mxu0 0.0
        %420 = vmatpush1.xpose.msra.mxu0 0.0
        %421 = vmatprep.subr.mxu0 0.0
        %422 = vmatpush1.xpose.msra.mxu0 0.0
        %423 = vmatprep.subr.mxu0 0.0
        %424 = vmatpush1.xpose.msra.mxu0 0.0
        %425 = vmatprep.subr.mxu0 0.0
        %426 = vmatpush1.xpose.msra.mxu0 0.0
        %427 = vmatprep.subr.mxu0 0.0
        %428 = vmatpush1.xpose.msra.mxu0 0.0
        %429 = vmatprep.subr.mxu0 0.0
        %430 = vmatpush1.xpose.msra.mxu0 0.0
        %431 = vmatprep.subr.mxu0 0.0
        %432 = vmatpush1.xpose.msra.mxu0 0.0
        %433 = vmatprep.subr.mxu0 0.0
        %434 = vmatpush1.xpose.msra.mxu0 0.0
        %435 = vmatprep.subr.mxu0 0.0
        %436 = vmatpush1.xpose.msra.mxu0 0.0
        %437 = vmatprep.subr.mxu0 0.0
        %438 = vmatpush1.xpose.msra.mxu0 0.0
        %439 = vmatprep.subr.mxu0 0.0
        %440 = vmatpush1.xpose.msra.mxu0 0.0
        %441 = vmatprep.subr.mxu0 0.0
        %442 = vmatpush1.xpose.msra.mxu0 0.0
        %443 = vmatprep.subr.mxu0 0.0
        %444 = vmatpush1.xpose.msra.mxu0 0.0
        %445 = vmatprep.subr.mxu0 0.0
        %446 = vmatpush1.xpose.msra.mxu0 0.0
        %447 = vmatprep.subr.mxu0 0.0
        %448 = vmatpush1.xpose.msra.mxu0 0.0
        %449 = vmatprep.subr.mxu0 0.0
        %450 = vmatpush1.xpose.msra.mxu0 0.0
        %451 = vmatprep.subr.mxu0 0.0
        %452 = vmatpush1.xpose.msra.mxu0 0.0
        %453 = vmatprep.subr.mxu0 0.0
        %454 = vmatpush1.xpose.msra.mxu0 0.0
        %455 = vmatprep.subr.mxu0 0.0
        %456 = vmatpush1.xpose.msra.mxu0 0.0
        %457 = vmatprep.subr.mxu0 0.0
        %458 = vmatpush1.xpose.msra.mxu0 0.0
        %459 = vmatprep.subr.mxu0 0.0
        %460 = vmatpush1.xpose.msra.mxu0 0.0
        %461 = vmatprep.subr.mxu0 0.0
        %462 = vmatpush1.xpose.msra.mxu0 0.0
        %463 = vmatprep.subr.mxu0 0.0
        %464 = vmatpush1.xpose.msra.mxu0 0.0
        %465 = vmatprep.subr.mxu0 0.0
        %466 = vmatpush1.xpose.msra.mxu0 0.0
        %467 = vmatprep.subr.mxu0 0.0
        %468 = vmatpush1.xpose.msra.mxu0 0.0
        %469 = vmatprep.mubr.f32.mxu0 0.0
        %470 = vmatmul.mubr.f32.gmra.mrb[0].mxu0 %v397
        %v471 = vpop.f32.mrb[0].mxu0
        %v472 = vadd.f32 %v388, %v471
        %v473 = vpop.f32.mrb[0].mxu0
        %474 = vdwg.mxu0
        %v475 = vld [vmem:[%s3] sm:$0x1]
        %v477 = vlaneseq
        %v478 = vshrl.u32 %v477, 7
        %v479 = vsub.s32 0, %v478
        %v480 = vrot.slane %v475, %v479
        %v482 = vadd.f32 %v472, %v480
        %v483 = vtanh.pop %v482
        %vm484 = vcmask 195584
        %v486 = vsel %vm484, 1.0, 0
        %v489 = vsel %vm484, %v483, 0
        %491 = vmatprep.subr.mxu0 0.0
        %492 = vmatpush1.xpose.msra.mxu0 %v489
        %493 = vmatprep.subr.mxu0 0.0
        %494 = vmatpush1.xpose.msra.mxu0 0.0
        %495 = vmatprep.subr.mxu0 0.0
        %496 = vmatpush1.xpose.msra.mxu0 0.0
        %497 = vmatprep.subr.mxu0 0.0
        %498 = vmatpush1.xpose.msra.mxu0 0.0
        %499 = vmatprep.subr.mxu0 0.0
        %500 = vmatpush1.xpose.msra.mxu0 0.0
        %501 = vmatprep.subr.mxu0 0.0
        %502 = vmatpush1.xpose.msra.mxu0 0.0
        %503 = vmatprep.subr.mxu0 0.0
        %504 = vmatpush1.xpose.msra.mxu0 0.0
        %505 = vmatprep.subr.mxu0 0.0
        %506 = vmatpush1.xpose.msra.mxu0 0.0
        %507 = vmatprep.subr.mxu0 0.0
        %508 = vmatpush1.xpose.msra.mxu0 0.0
        %509 = vmatprep.subr.mxu0 0.0
        %510 = vmatpush1.xpose.msra.mxu0 0.0
        %511 = vmatprep.subr.mxu0 0.0
        %512 = vmatpush1.xpose.msra.mxu0 0.0
        %513 = vmatprep.subr.mxu0 0.0
        %514 = vmatpush1.xpose.msra.mxu0 0.0
        %515 = vmatprep.subr.mxu0 0.0
        %516 = vmatpush1.xpose.msra.mxu0 0.0
        %517 = vmatprep.subr.mxu0 0.0
        %518 = vmatpush1.xpose.msra.mxu0 0.0
        %519 = vmatprep.subr.mxu0 0.0
        %520 = vmatpush1.xpose.msra.mxu0 0.0
        %521 = vmatprep.subr.mxu0 0.0
        %522 = vmatpush1.xpose.msra.mxu0 0.0
        %523 = vmatprep.subr.mxu0 0.0
        %524 = vmatpush1.xpose.msra.mxu0 0.0
        %525 = vmatprep.subr.mxu0 0.0
        %526 = vmatpush1.xpose.msra.mxu0 0.0
        %527 = vmatprep.subr.mxu0 0.0
        %528 = vmatpush1.xpose.msra.mxu0 0.0
        %529 = vmatprep.subr.mxu0 0.0
        %530 = vmatpush1.xpose.msra.mxu0 0.0
        %531 = vmatprep.subr.mxu0 0.0
        %532 = vmatpush1.xpose.msra.mxu0 0.0
        %533 = vmatprep.subr.mxu0 0.0
        %534 = vmatpush1.xpose.msra.mxu0 0.0
        %535 = vmatprep.subr.mxu0 0.0
        %536 = vmatpush1.xpose.msra.mxu0 0.0
        %537 = vmatprep.subr.mxu0 0.0
        %538 = vmatpush1.xpose.msra.mxu0 0.0
        %539 = vmatprep.subr.mxu0 0.0
        %540 = vmatpush1.xpose.msra.mxu0 0.0
        %541 = vmatprep.subr.mxu0 0.0
        %542 = vmatpush1.xpose.msra.mxu0 0.0
        %543 = vmatprep.subr.mxu0 0.0
        %544 = vmatpush1.xpose.msra.mxu0 0.0
        %545 = vmatprep.subr.mxu0 0.0
        %546 = vmatpush1.xpose.msra.mxu0 0.0
        %547 = vmatprep.subr.mxu0 0.0
        %548 = vmatpush1.xpose.msra.mxu0 0.0
        %549 = vmatprep.subr.mxu0 0.0
        %550 = vmatpush1.xpose.msra.mxu0 0.0
        %551 = vmatprep.subr.mxu0 0.0
        %552 = vmatpush1.xpose.msra.mxu0 0.0
        %553 = vmatprep.subr.mxu0 0.0
        %554 = vmatpush1.xpose.msra.mxu0 0.0
        %555 = vmatprep.mubr.f32.mxu0 0.0
        %556 = vmatmul.mubr.f32.gmra.mrb[0].mxu0 %v486
        %v557 = vpop.f32.mrb[0].mxu0
        %v558 = vadd.f32 0.0, %v557
        %v559 = vpop.f32.mrb[0].mxu0
        %560 = vdwg.mxu0
        %vm561 = vcmask 57344
        %v562 = vsel %vm561, %v558, -inf
        %563 = vmax.xlane.f32.xlu0 %v562
        %v564 = vpop.xlane.xlu0 %563
        %v565 = vsub.f32 %v558, %v564
        %v566 = vmul.f32 %v565, 1.442695
        %v567 = vpow.pop %v566
        %v568 = vsel %vm561, %v567, 0.0
        %569 = vadd.xlane.f32.xlu0 %v568
        %v570 = vpop.xlane.xlu0 %569
        %v571 = vrcp.pop %v570
        %v572 = vmul.f32 %v567, %v571
        %vm573 = vcmask 64512
        %v575 = vsel %vm573, %v572, 0
        %577 = vmatprep.subr.mxu0 0.0
        %578 = vmatpush1.msra.mxu0 %v298
        %579 = vmatprep.subr.mxu0 0.0
        %580 = vmatpush1.msra.mxu0 0.0
        %581 = vmatprep.subr.mxu0 0.0
        %582 = vmatpush1.msra.mxu0 0.0
        %583 = vmatprep.subr.mxu0 0.0
        %584 = vmatpush1.msra.mxu0 0.0
        %585 = vmatprep.subr.mxu0 0.0
        %586 = vmatpush1.msra.mxu0 0.0
        %587 = vmatprep.subr.mxu0 0.0
        %588 = vmatpush1.msra.mxu0 0.0
        %589 = vmatprep.subr.mxu0 0.0
        %590 = vmatpush1.msra.mxu0 0.0
        %591 = vmatprep.subr.mxu0 0.0
        %592 = vmatpush1.msra.mxu0 0.0
        %593 = vmatprep.subr.mxu0 0.0
        %594 = vmatpush1.msra.mxu0 0.0
        %595 = vmatprep.subr.mxu0 0.0
        %596 = vmatpush1.msra.mxu0 0.0
        %597 = vmatprep.subr.mxu0 0.0
        %598 = vmatpush1.msra.mxu0 0.0
        %599 = vmatprep.subr.mxu0 0.0
        %600 = vmatpush1.msra.mxu0 0.0
        %601 = vmatprep.subr.mxu0 0.0
        %602 = vmatpush1.msra.mxu0 0.0
        %603 = vmatprep.subr.mxu0 0.0
        %604 = vmatpush1.msra.mxu0 0.0
        %605 = vmatprep.subr.mxu0 0.0
        %606 = vmatpush1.msra.mxu0 0.0
        %607 = vmatprep.subr.mxu0 0.0
        %608 = vmatpush1.msra.mxu0 0.0
        %609 = vmatprep.subr.mxu0 0.0
        %610 = vmatpush1.msra.mxu0 0.0
        %611 = vmatprep.subr.mxu0 0.0
        %612 = vmatpush1.msra.mxu0 0.0
        %613 = vmatprep.subr.mxu0 0.0
        %614 = vmatpush1.msra.mxu0 0.0
        %615 = vmatprep.subr.mxu0 0.0
        %616 = vmatpush1.msra.mxu0 0.0
        %617 = vmatprep.subr.mxu0 0.0
        %618 = vmatpush1.msra.mxu0 0.0
        %619 = vmatprep.subr.mxu0 0.0
        %620 = vmatpush1.msra.mxu0 0.0
        %621 = vmatprep.subr.mxu0 0.0
        %622 = vmatpush1.msra.mxu0 0.0
        %623 = vmatprep.subr.mxu0 0.0
        %624 = vmatpush1.msra.mxu0 0.0
        %625 = vmatprep.subr.mxu0 0.0
        %626 = vmatpush1.msra.mxu0 0.0
        %627 = vmatprep.subr.mxu0 0.0
        %628 = vmatpush1.msra.mxu0 0.0
        %629 = vmatprep.subr.mxu0 0.0
        %630 = vmatpush1.msra.mxu0 0.0
        %631 = vmatprep.subr.mxu0 0.0
        %632 = vmatpush1.msra.mxu0 0.0
        %633 = vmatprep.subr.mxu0 0.0
        %634 = vmatpush1.msra.mxu0 0.0
        %635 = vmatprep.subr.mxu0 0.0
        %636 = vmatpush1.msra.mxu0 0.0
        %637 = vmatprep.subr.mxu0 0.0
        %638 = vmatpush1.msra.mxu0 0.0
        %639 = vmatprep.subr.mxu0 0.0
        %640 = vmatpush1.msra.mxu0 0.0
        %641 = vmatprep.mubr.f32.mxu0 0.0
        %642 = vmatmul.mubr.f32.gmra.mrb[0].mxu0 %v575
        %v643 = vpop.f32.mrb[0].mxu0
        %v644 = vadd.f32 0.0, %v643
        %v645 = vpop.f32.mrb[0].mxu0
        %646 = vdwg.mxu0
        %v647 = vmul.f32 %v298, %v298
        %v648 = vsel %vm395, 1.0, 0
        %v651 = vsel %vm395, %v647, 0
        %653 = vmatprep.subr.mxu0 0.0
        %654 = vmatpush1.xpose.msra.mxu0 %v651
        %655 = vmatprep.subr.mxu0 0.0
        %656 = vmatpush1.xpose.msra.mxu0 0.0
        %657 = vmatprep.subr.mxu0 0.0
        %658 = vmatpush1.xpose.msra.mxu0 0.0
        %659 = vmatprep.subr.mxu0 0.0
        %660 = vmatpush1.xpose.msra.mxu0 0.0
        %661 = vmatprep.subr.mxu0 0.0
        %662 = vmatpush1.xpose.msra.mxu0 0.0
        %663 = vmatprep.subr.mxu0 0.0
        %664 = vmatpush1.xpose.msra.mxu0 0.0
        %665 = vmatprep.subr.mxu0 0.0
        %666 = vmatpush1.xpose.msra.mxu0 0.0
        %667 = vmatprep.subr.mxu0 0.0
        %668 = vmatpush1.xpose.msra.mxu0 0.0
        %669 = vmatprep.subr.mxu0 0.0
        %670 = vmatpush1.xpose.msra.mxu0 0.0
        %671 = vmatprep.subr.mxu0 0.0
        %672 = vmatpush1.xpose.msra.mxu0 0.0
        %673 = vmatprep.subr.mxu0 0.0
        %674 = vmatpush1.xpose.msra.mxu0 0.0
        %675 = vmatprep.subr.mxu0 0.0
        %676 = vmatpush1.xpose.msra.mxu0 0.0
        %677 = vmatprep.subr.mxu0 0.0
        %678 = vmatpush1.xpose.msra.mxu0 0.0
        %679 = vmatprep.subr.mxu0 0.0
        %680 = vmatpush1.xpose.msra.mxu0 0.0
        %681 = vmatprep.subr.mxu0 0.0
        %682 = vmatpush1.xpose.msra.mxu0 0.0
        %683 = vmatprep.subr.mxu0 0.0
        %684 = vmatpush1.xpose.msra.mxu0 0.0
        %685 = vmatprep.subr.mxu0 0.0
        %686 = vmatpush1.xpose.msra.mxu0 0.0
        %687 = vmatprep.subr.mxu0 0.0
        %688 = vmatpush1.xpose.msra.mxu0 0.0
        %689 = vmatprep.subr.mxu0 0.0
        %690 = vmatpush1.xpose.msra.mxu0 0.0
        %691 = vmatprep.subr.mxu0 0.0
        %692 = vmatpush1.xpose.msra.mxu0 0.0
        %693 = vmatprep.subr.mxu0 0.0
        %694 = vmatpush1.xpose.msra.mxu0 0.0
        %695 = vmatprep.subr.mxu0 0.0
        %696 = vmatpush1.xpose.msra.mxu0 0.0
        %697 = vmatprep.subr.mxu0 0.0
        %698 = vmatpush1.xpose.msra.mxu0 0.0
        %699 = vmatprep.subr.mxu0 0.0
        %700 = vmatpush1.xpose.msra.mxu0 0.0
        %701 = vmatprep.subr.mxu0 0.0
        %702 = vmatpush1.xpose.msra.mxu0 0.0
        %703 = vmatprep.subr.mxu0 0.0
        %704 = vmatpush1.xpose.msra.mxu0 0.0
        %705 = vmatprep.subr.mxu0 0.0
        %706 = vmatpush1.xpose.msra.mxu0 0.0
        %707 = vmatprep.subr.mxu0 0.0
        %708 = vmatpush1.xpose.msra.mxu0 0.0
        %709 = vmatprep.subr.mxu0 0.0
        %710 = vmatpush1.xpose.msra.mxu0 0.0
        %711 = vmatprep.subr.mxu0 0.0
        %712 = vmatpush1.xpose.msra.mxu0 0.0
        %713 = vmatprep.subr.mxu0 0.0
        %714 = vmatpush1.xpose.msra.mxu0 0.0
        %715 = vmatprep.subr.mxu0 0.0
        %716 = vmatpush1.xpose.msra.mxu0 0.0
        %717 = vmatprep.mubr.f32.mxu0 0.0
        %718 = vmatmul.mubr.f32.gmra.mrb[0].mxu0 %v648
        %v719 = vpop.f32.mrb[0].mxu0
        %v720 = vadd.f32 0.0, %v719
        %v721 = vpop.f32.mrb[0].mxu0
        %722 = vdwg.mxu0
        %v723 = vrsqrt.pop %v720
        %v724 = vmul.f32 %v720, %v723
        %vm725 = vcmp.eq.f32.partialorder %v720, inf
        %v726 = vsel %vm725, %v720, %v724
        %vm727 = vcmp.eq.f32.partialorder %v720, 0.0
        %v728 = vand.u32 %v720, 2147483648
        %v729 = vsel %vm727, %v728, %v726
        %v730 = vmul.f32 %v572, %v729
        %vm731 = vcmask 253952
        %732 = vst.msk [vmem:[%s290] sm:$0x1] %vm731, %v644
        %733 = vst.msk [vmem:[%s296] sm:$0x1] %vm561, %v730
        %s734 = sand.u32 %s131, 1
        %s735 = scalar_lea.sflag [#allocation4], %s734
        %s736 = sand.u32 %s131, 1
        %s737 = scalar_lea.vmem [#allocation8], %s736
        %s738 = sand.u32 %s157, 1
        %s739 = scalar_lea.sflag [#allocation10], %s738
        %s740 = sand.u32 %s157, 1
        %s741 = scalar_lea.vmem [#allocation9], %s740
        // Predicated region
        $region49: #{tpu_custom_call.1} parent=35 // pred_check
          %p742 = pneg %p141
        $region50: #{tpu_custom_call.1} parent=35 // pred_check_branch
          %744 = sbr.rel (%p742) target = $region52
        $region51: #{tpu_custom_call.1} parent=35 // pred_region
          %s746 = ssub.s32 16, 16
          %747 = vsyncadd %s735, %s746
          %s748 = smul.addr %s29, 16
          %s749 = scalar_lea.hbm %s4, %s748
          %s751 = sshll.u32 %s737, 4
          %s752 = int_to_ptr.vmem [resolvable:$true] %s751
          %754 = dma.vmem_to_hbm [thread:$0]  %s752, 16, %s749, %s735
        $region52: #{tpu_custom_call.1} parent=35 // pred_fallthru
          _
        // Predicated region
        $region53: #{tpu_custom_call.1} parent=35 // pred_check
          %p755 = pneg %p167
        $region54: #{tpu_custom_call.1} parent=35 // pred_check_branch
          %757 = sbr.rel (%p755) target = $region56
        $region55: #{tpu_custom_call.1} parent=35 // pred_region
          %s759 = ssub.s32 16, 16
          %760 = vsyncadd %s739, %s759
          %s761 = smul.addr %s29, 16
          %s762 = scalar_lea.hbm %s5, %s761
          %s764 = sshll.u32 %s741, 4
          %s765 = int_to_ptr.vmem [resolvable:$true] %s764
          %767 = dma.vmem_to_hbm [thread:$0]  %s765, 16, %s762, %s739
        $region56: #{tpu_custom_call.1} parent=35 // pred_fallthru
          _
      $region36: #{tpu_custom_call.1} parent=5 // pred_fallthru
        _
      %p768 = scmp.le.s32.totalorder 2, %s24
      // Predicated region
      $region57: #{tpu_custom_call.1} parent=5 // pred_check
        %p769 = pneg %p768
      $region58: #{tpu_custom_call.1} parent=5 // pred_check_branch
        %771 = sbr.rel (%p769) target = $region60
      $region59: #{tpu_custom_call.1} parent=5 // pred_region
        %s772 = ssub.s32 %s24, 2
        // Predicated region
        $region61: #{tpu_custom_call.1} parent=59 // pred_check
          %p773 = pneg %p147
        $region62: #{tpu_custom_call.1} parent=59 // pred_check_branch
          %775 = sbr.rel (%p773) target = $region64
        $region63: #{tpu_custom_call.1} parent=59 // pred_region
          %s776 = sand.u32 %s132, 1
          %s777 = scalar_lea.sflag [#allocation4], %s776
          %s778 = sand.u32 %s132, 1
          %s779 = scalar_lea.vmem [#allocation8], %s778
          %780 = dma.done %s777, 16
        $region64: #{tpu_custom_call.1} parent=59 // pred_fallthru
          _
        // Predicated region
        $region65: #{tpu_custom_call.1} parent=59 // pred_check
          %p781 = pneg %p173
        $region66: #{tpu_custom_call.1} parent=59 // pred_check_branch
          %783 = sbr.rel (%p781) target = $region68
        $region67: #{tpu_custom_call.1} parent=59 // pred_region
          %s784 = sand.u32 %s158, 1
          %s785 = scalar_lea.sflag [#allocation10], %s784
          %s786 = sand.u32 %s158, 1
          %s787 = scalar_lea.vmem [#allocation9], %s786
          %788 = dma.done %s785, 16
        $region68: #{tpu_custom_call.1} parent=59 // pred_fallthru
          _
      $region60: #{tpu_custom_call.1} parent=5 // pred_fallthru
        _
    $region6: #{tpu_custom_call.1} parent=1 // loop_footer
      %s28 = sadd.s32 1, %s24
    $region7: #{tpu_custom_call.1} parent=1 // loop_footer_branch
      %23 = sbr.rel target = $region3
    $region8: #{tpu_custom_call.1} parent=1 // loop_exit
      _
    %789 = vsyncpa [#allocation3], 1
    %s790 = scalar_lea.sflag [#allocation3], 1
    %791 = vsyncpa %s790, 1
    %792 = vsyncpa [#allocation6], 1
    %s793 = scalar_lea.sflag [#allocation6], 1
    %794 = vsyncpa %s793, 1
    %795 = vsyncpa [#allocation4], 1
    %s796 = scalar_lea.sflag [#allocation4], 1
    %797 = vsyncpa %s796, 1
    %798 = vsyncpa [#allocation10], 1
    %s799 = scalar_lea.sflag [#allocation10], 1
    %800 = vsyncpa %s799, 1

</llo_original>
